<compile_context>
chip_gen: v5e
topology: v5e:2x2
jax: 0.10.0
libtpu: 0.0.40
codegen_flags: <defaults>
</compile_context>

<pallas_src>
import functools

import jax
import jax.numpy as jnp
from jax.experimental import pallas as pl
from jax.experimental.pallas import tpu as pltpu

EPS = 1e-5
_MIB = 1024 * 1024


def _round_up(v, m):
    return ((v + m - 1) // m) * m


@functools.lru_cache(maxsize=None)
def _tpu_budgets():
    """(scoped_vmem_limit, per_block_budget, fused_vmem_limit) for this chip."""
    cap = 64 * _MIB  # conservative default (v7x per-core VMEM)
    try:
        info = pltpu.get_tpu_info()
        c = int(getattr(info, "vmem_capacity_bytes", 0) or 0)
        if c > 0:
            cap = c
    except Exception:
        pass
    scoped_limit = int(min(cap // 2, 64 * _MIB))          # 32 MiB v7x, 64 MiB v5e/v6e
    block_budget = 8 * _MIB if cap >= 100 * _MIB else 4 * _MIB
    fused_limit = int(min(cap * 3 // 4, 96 * _MIB))       # 48 MiB v7x, 96 MiB v5e/v6e
    return scoped_limit, block_budget, fused_limit


def _choose_tiles(R, L, itemsize, block_budget):
    """Pick (Rt, Lt) for the streaming kernels.

    Double-buffer aware: phase 2 holds ~2 input + 2 output blocks, so a single
    block is capped at block_budget bytes.  Rt is a multiple of 8 (or == R,
    with >= 2 row blocks when R >= 16 so v7x megacore can shard phase 1);
    Lt is a multiple of 128 (or == L) to keep stores lane-dense.
    """
    max_elems = max(8 * 128, block_budget // max(1, itemsize))
    if R < 16:
        Rt = R                                            # single row block (full dim)
    else:
        rt_split = _round_up(pl.cdiv(R, 2), 8)            # >= 2 row blocks
        rt_budget = max(8, (max_elems // min(L, 4096)) // 8 * 8)
        Rt = max(8, min(rt_split, rt_budget))
    lane_budget = max(128, max_elems // Rt)
    Lt = L if lane_budget >= L else (lane_budget // 128) * 128
    return Rt, Lt


# ---------------------------------------------------------------------------
# Kernels
# ---------------------------------------------------------------------------
def _fused_kernel(x_ref, sc_ref, bs_ref, g_ref, be_ref, o_ref, *, n):
    """Single-pass FiLM + BN: x resident in VMEM -> stats + folded FMA + store."""
    x = x_ref[...].astype(jnp.float32)                                      # (B, C, L)
    inv_n = 1.0 / n
    s = jnp.sum(jnp.sum(x, axis=2, keepdims=True), axis=0, keepdims=True)   # (1, C, 1)
    q = jnp.sum(jnp.sum(x * x, axis=2, keepdims=True), axis=0, keepdims=True)
    mean = s * inv_n
    # NOTE: single-pass E[x^2] - mean^2 (can lose precision if |mean| >> std).
    var = jnp.maximum(q * inv_n - mean * mean, 0.0)                         # biased (BN training)
    inv = jax.lax.rsqrt(var + EPS)
    ig = inv * g_ref[...]                                                   # (1, C, 1)
    a = ig * sc_ref[...]                                                    # (B, C, 1)
    b = (be_ref[...] - mean * ig) * sc_ref[...] + bs_ref[...]               # (B, C, 1)
    o_ref[...] = (x * a + b).astype(o_ref.dtype)


def _stats_kernel(x_ref, s_ref, q_ref, *, rem):
    """Per-row sum and sum-of-squares over L, accumulated across L tiles.

    Output blocks (Rt, 1) are resident across the inner ("arbitrary") L axis
    and disjoint per row partition, so the rows axis is safely "parallel".
    `rem` = L % Lt; when nonzero, only the last L step masks the ragged tail.
    """
    @pl.when(pl.program_id(1) == 0)
    def _():
        s_ref[...] = jnp.zeros_like(s_ref)
        q_ref[...] = jnp.zeros_like(q_ref)

    def accum(x):
        s_ref[...] += jnp.sum(x, axis=1, keepdims=True)
        q_ref[...] += jnp.sum(x * x, axis=1, keepdims=True)

    if rem == 0:
        accum(x_ref[...].astype(jnp.float32))
    else:
        last_l = pl.num_programs(1) - 1

        @pl.when(pl.program_id(1) != last_l)
        def _():
            accum(x_ref[...].astype(jnp.float32))

        @pl.when(pl.program_id(1) == last_l)
        def _():
            x = x_ref[...].astype(jnp.float32)
            lane = jax.lax.broadcasted_iota(jnp.int32, x.shape, 1)
            accum(jnp.where(lane < rem, x, 0.0))


def _apply_kernel(x_ref, a_ref, b_ref, o_ref):
    """out = x * A + Bc with A/Bc as (Rt, 1): free lane broadcast on the VPU."""
    x = x_ref[...].astype(jnp.float32)
    o_ref[...] = (x * a_ref[...] + b_ref[...]).astype(o_ref.dtype)


# ---------------------------------------------------------------------------
# Wrapper
# ---------------------------------------------------------------------------
def film_forward(x, time, w_scale, b_scale, w_bias, b_bias, gamma, beta,
                 use_bn=True, mode="auto", tiles=None, donate_x=False):
    """x: (B, C, L); time: (B,); w_*: (C, 1); b_*, gamma, beta: (C,).

    mode: "auto" | "fused" | "streaming".  donate_x aliases x's HBM buffer to
    the output (only safe when the caller no longer needs x).
    """
    assert mode in ("auto", "fused", "streaming")
    B, C, L = x.shape
    R = B * C
    f32 = jnp.float32
    scoped_limit, block_budget, fused_limit = _tpu_budgets()

    t = jnp.reshape(time, (-1, 1)).astype(f32)                # (B, 1)
    ws = jnp.reshape(w_scale, (1, C)).astype(f32)             # W^T (in_features == 1)
    wb = jnp.reshape(w_bias, (1, C)).astype(f32)
    bs = jnp.reshape(b_scale, (1, C)).astype(f32)
    bb = jnp.reshape(b_bias, (1, C)).astype(f32)
    g = jnp.reshape(gamma, (C,)).astype(f32)
    be = jnp.reshape(beta, (C,)).astype(f32)

    # FiLM Linear(1 -> C) degenerates to a broadcast multiply-add (MXU unused).
    scale = t * ws + bs                                       # (B, C)
    bias = t * wb + bb                                        # (B, C)

    aliases = {0: 0} if donate_x else {}

    # ---- fused single-pass path (x resident in VMEM) ----
    if use_bn:
        padded_f32 = B * _round_up(C, 8) * _round_up(L, 128) * 4
        fused_ok = 3 * padded_f32 <= fused_limit
        if mode == "fused" or (mode == "auto" and fused_ok):
            return pl.pallas_call(
                functools.partial(_fused_kernel, n=float(B * L)),
                out_shape=jax.ShapeDtypeStruct((B, C, L), x.dtype),
                compiler_params=pltpu.CompilerParams(
                    vmem_limit_bytes=fused_limit),
                input_output_aliases=aliases,
            )(x, scale[:, :, None], bias[:, :, None],
              g.reshape(1, C, 1), be.reshape(1, C, 1))

    # ---- streaming two-pass path: view x as (R, L) rows ----
    xr = x.reshape(R, L)
    itemsize = x.dtype.itemsize
    Rt, Lt = _choose_tiles(R, L, itemsize, block_budget) if tiles is None else tiles
    P = pl.cdiv(R, Rt)
    grid_l = pl.cdiv(L, Lt)

    if use_bn:
        # Phase 1: per-row stats (megacore-shardable across row partitions).
        row_sum, row_sq = pl.pallas_call(
            functools.partial(_stats_kernel, rem=L % Lt),
            out_shape=(jax.ShapeDtypeStruct((R, 1), f32),
                       jax.ShapeDtypeStruct((R, 1), f32)),
            grid=(P, grid_l),
            in_specs=[pl.BlockSpec((Rt, Lt), lambda p, l: (p, l))],
            out_specs=(pl.BlockSpec((Rt, 1), lambda p, l: (p, 0)),
                       pl.BlockSpec((Rt, 1), lambda p, l: (p, 0))),
            compiler_params=pltpu.CompilerParams(
                dimension_semantics=("parallel", "arbitrary"),
                vmem_limit_bytes=scoped_limit),
        )(xr)

        # Tiny XLA glue: per-channel moments + fold BN-affine + FiLM into a FMA.
        n = float(B * L)
        ch_sum = row_sum.reshape(B, C).sum(axis=0)            # (C,)
        ch_sq = row_sq.reshape(B, C).sum(axis=0)              # (C,)
        mean = ch_sum / n
        var = jnp.maximum(ch_sq / n - mean * mean, 0.0)       # biased (BN training)
        inv = jax.lax.rsqrt(var + EPS)
        ig = inv * g                                          # (C,)
        A = ig[None, :] * scale                               # (B, C)
        Bc = (be - mean * ig)[None, :] * scale + bias         # (B, C)
    else:
        A, Bc = scale, bias

    # Phase 2: fully parallel tiled FMA apply.
    out2d = pl.pallas_call(
        _apply_kernel,
        out_shape=jax.ShapeDtypeStruct((R, L), x.dtype),
        grid=(P, grid_l),
        in_specs=[pl.BlockSpec((Rt, Lt), lambda p, l: (p, l)),
                  pl.BlockSpec((Rt, 1), lambda p, l: (p, 0)),
                  pl.BlockSpec((Rt, 1), lambda p, l: (p, 0))],
        out_specs=pl.BlockSpec((Rt, Lt), lambda p, l: (p, l)),
        compiler_params=pltpu.CompilerParams(
            dimension_semantics=("parallel", "parallel"),
            vmem_limit_bytes=scoped_limit),
        input_output_aliases=aliases,
    )(xr, A.reshape(R, 1).astype(f32), Bc.reshape(R, 1).astype(f32))
    return out2d.reshape(B, C, L)


# ---------------------------------------------------------------------------
# Pure-JAX reference (mirrors the PyTorch forward, training-mode BN)
# ---------------------------------------------------------------------------
def film_ref(x, time, w_scale, b_scale, w_bias, b_bias, gamma, beta, use_bn=True):
    B, C, L = x.shape
    if use_bn:
        mean = jnp.mean(x, axis=(0, 2), keepdims=True)
        var = jnp.mean((x - mean) ** 2, axis=(0, 2), keepdims=True)  # biased, as in BN
        xn = (x - mean) / jnp.sqrt(var + EPS)
        xn = xn * gamma.reshape(1, C, 1) + beta.reshape(1, C, 1)
    else:
        xn = x
    t = time.reshape(-1, 1).astype(x.dtype)
    scale = t @ w_scale.T + b_scale                                  # (B, C)
    bias = t @ w_bias.T + b_bias
    return xn * scale[:, :, None] + bias[:, :, None]


def _make_params(key, C):
    kws, kbs, kwb, kbb, kg, kbe = jax.random.split(key, 6)
    # The module __init__ makes FiLM the identity (scale weight 0 / bias 1,
    # bias weight 0 / bias 0); use random values instead to exercise the math.
    w_scale = 0.1 * jax.random.normal(kws, (C, 1), dtype=jnp.float32)
    b_scale = 1.0 + 0.1 * jax.random.normal(kbs, (C,), dtype=jnp.float32)
    w_bias = 0.1 * jax.random.normal(kwb, (C, 1), dtype=jnp.float32)
    b_bias = 0.1 * jax.random.normal(kbb, (C,), dtype=jnp.float32)
    gamma = 1.0 + 0.1 * jax.random.normal(kg, (C,), dtype=jnp.float32)
    beta = 0.1 * jax.random.normal(kbe, (C,), dtype=jnp.float32)
    return w_scale, b_scale, w_bias, b_bias, gamma, beta


if __name__ == "__main__":
    key = jax.random.PRNGKey(0)
    k1, k2, k3, k4, k5, k6 = jax.random.split(key, 6)

    # --- small shape: fused single-pass path -------------------------------
    B, C, L = 2, 4, 16
    x = jax.random.normal(k1, (B, C, L), dtype=jnp.float32)
    time = jax.random.uniform(k2, (B,), dtype=jnp.float32)
    params = _make_params(k3, C)

    out = jax.block_until_ready(film_forward(x, time, *params))
    ref = film_ref(x, time, *params)
    assert out.shape == (B, C, L) and out.dtype == x.dtype
    assert jnp.allclose(out, ref, atol=1e-4, rtol=1e-4), "fused path mismatch"

    # use_bn=False (Identity norm) -> streaming apply-only path.
    out_nb = jax.block_until_ready(film_forward(x, time, *params, use_bn=False))
    ref_nb = film_ref(x, time, *params, use_bn=False)
    assert jnp.allclose(out_nb, ref_nb, atol=1e-4, rtol=1e-4), "no-BN path mismatch"

    # --- larger, non-aligned shape ------------------------------------------
    B2, C2, L2 = 2, 12, 1040
    x2 = jax.random.normal(k4, (B2, C2, L2), dtype=jnp.float32)
    time2 = jax.random.uniform(k5, (B2,), dtype=jnp.float32)
    params2 = _make_params(k6, C2)
    ref2 = film_ref(x2, time2, *params2)

    # Auto dispatch (fused; C and L not multiples of 8 / 128).
    out2 = jax.block_until_ready(film_forward(x2, time2, *params2))
    assert jnp.allclose(out2, ref2, atol=1e-4, rtol=1e-4), "fused (ragged dims) mismatch"

    # Forced streaming path with ragged row blocks (R=24, Rt=16) and ragged
    # lane tiles (L=1040, Lt=256 -> 5 tiles, last masked).
    out3 = jax.block_until_ready(
        film_forward(x2, time2, *params2, mode="streaming", tiles=(16, 256)))
    assert jnp.allclose(out3, ref2, atol=1e-4, rtol=1e-4), "streaming path mismatch"

    # Streaming path with auto-chosen tiles.
    out4 = jax.block_until_ready(
        film_forward(x2, time2, *params2, mode="streaming"))
    assert jnp.allclose(out4, ref2, atol=1e-4, rtol=1e-4), "streaming (auto tiles) mismatch"

    print("KERNEL_OK")
</pallas_src>

<mosaic_0001>
module attributes {stable_mosaic.version = 11 : i64} {
  func.func @_fused_kernel(%arg0: memref<2x4x16xf32, #tpu.memory_space<vmem>>, %arg1: memref<2x4x1xf32, #tpu.memory_space<vmem>>, %arg2: memref<2x4x1xf32, #tpu.memory_space<vmem>>, %arg3: memref<1x4x1xf32, #tpu.memory_space<vmem>>, %arg4: memref<1x4x1xf32, #tpu.memory_space<vmem>>, %arg5: memref<2x4x16xf32, #tpu.memory_space<vmem>>) attributes {dimension_semantics = [], scalar_prefetch = 0 : i64, scratch_operands = 0 : i64, tpu.core_type = #tpu.core_type<tc>} {
    %c0 = arith.constant 0 : index
    %c0_0 = arith.constant 0 : index
    %c0_1 = arith.constant 0 : index
    %0 = vector.load %arg0[%c0, %c0_0, %c0_1] : memref<2x4x16xf32, #tpu.memory_space<vmem>>, vector<2x4x16xf32>
    %cst = arith.constant dense<0.000000e+00> : vector<2x4xf32>
    %1 = vector.multi_reduction <add>, %0, %cst [2] : vector<2x4x16xf32> to vector<2x4xf32>
    %2 = vector.shape_cast %1 : vector<2x4xf32> to vector<2x4x1xf32>
    %cst_2 = arith.constant dense<0.000000e+00> : vector<4x1xf32>
    %3 = vector.multi_reduction <add>, %2, %cst_2 [0] : vector<2x4x1xf32> to vector<4x1xf32>
    %4 = vector.shape_cast %3 : vector<4x1xf32> to vector<1x4x1xf32>
    %5 = arith.mulf %0, %0 : vector<2x4x16xf32>
    %cst_3 = arith.constant dense<0.000000e+00> : vector<2x4xf32>
    %6 = vector.multi_reduction <add>, %5, %cst_3 [2] : vector<2x4x16xf32> to vector<2x4xf32>
    %7 = vector.shape_cast %6 : vector<2x4xf32> to vector<2x4x1xf32>
    %cst_4 = arith.constant dense<0.000000e+00> : vector<4x1xf32>
    %8 = vector.multi_reduction <add>, %7, %cst_4 [0] : vector<2x4x1xf32> to vector<4x1xf32>
    %9 = vector.shape_cast %8 : vector<4x1xf32> to vector<1x4x1xf32>
    %cst_5 = arith.constant 3.125000e-02 : f32
    %10 = vector.broadcast %cst_5 : f32 to vector<1x4x1xf32>
    %11 = arith.mulf %4, %10 : vector<1x4x1xf32>
    %cst_6 = arith.constant 3.125000e-02 : f32
    %12 = vector.broadcast %cst_6 : f32 to vector<1x4x1xf32>
    %13 = arith.mulf %9, %12 : vector<1x4x1xf32>
    %14 = arith.mulf %11, %11 : vector<1x4x1xf32>
    %15 = arith.subf %13, %14 : vector<1x4x1xf32>
    %cst_7 = arith.constant 0.000000e+00 : f32
    %16 = vector.broadcast %cst_7 : f32 to vector<1x4x1xf32>
    %17 = arith.maximumf %15, %16 : vector<1x4x1xf32>
    %cst_8 = arith.constant 9.99999974E-6 : f32
    %18 = vector.broadcast %cst_8 : f32 to vector<1x4x1xf32>
    %19 = arith.addf %17, %18 : vector<1x4x1xf32>
    %20 = math.rsqrt %19 : vector<1x4x1xf32>
    %c0_9 = arith.constant 0 : index
    %c0_10 = arith.constant 0 : index
    %c0_11 = arith.constant 0 : index
    %21 = vector.load %arg3[%c0_9, %c0_10, %c0_11] : memref<1x4x1xf32, #tpu.memory_space<vmem>>, vector<1x4x1xf32>
    %22 = arith.mulf %20, %21 : vector<1x4x1xf32>
    %c0_12 = arith.constant 0 : index
    %c0_13 = arith.constant 0 : index
    %c0_14 = arith.constant 0 : index
    %23 = vector.load %arg1[%c0_12, %c0_13, %c0_14] : memref<2x4x1xf32, #tpu.memory_space<vmem>>, vector<2x4x1xf32>
    %24 = vector.broadcast %22 : vector<1x4x1xf32> to vector<2x4x1xf32>
    %25 = arith.mulf %24, %23 : vector<2x4x1xf32>
    %c0_15 = arith.constant 0 : index
    %c0_16 = arith.constant 0 : index
    %c0_17 = arith.constant 0 : index
    %26 = vector.load %arg4[%c0_15, %c0_16, %c0_17] : memref<1x4x1xf32, #tpu.memory_space<vmem>>, vector<1x4x1xf32>
    %27 = arith.mulf %11, %22 : vector<1x4x1xf32>
    %28 = arith.subf %26, %27 : vector<1x4x1xf32>
    %c0_18 = arith.constant 0 : index
    %c0_19 = arith.constant 0 : index
    %c0_20 = arith.constant 0 : index
    %29 = vector.load %arg1[%c0_18, %c0_19, %c0_20] : memref<2x4x1xf32, #tpu.memory_space<vmem>>, vector<2x4x1xf32>
    %30 = vector.broadcast %28 : vector<1x4x1xf32> to vector<2x4x1xf32>
    %31 = arith.mulf %30, %29 : vector<2x4x1xf32>
    %c0_21 = arith.constant 0 : index
    %c0_22 = arith.constant 0 : index
    %c0_23 = arith.constant 0 : index
    %32 = vector.load %arg2[%c0_21, %c0_22, %c0_23] : memref<2x4x1xf32, #tpu.memory_space<vmem>>, vector<2x4x1xf32>
    %33 = arith.addf %31, %32 : vector<2x4x1xf32>
    %34 = vector.broadcast %25 : vector<2x4x1xf32> to vector<2x4x16xf32>
    %35 = arith.mulf %0, %34 : vector<2x4x16xf32>
    %36 = vector.broadcast %33 : vector<2x4x1xf32> to vector<2x4x16xf32>
    %37 = arith.addf %35, %36 : vector<2x4x16xf32>
    %c0_24 = arith.constant 0 : index
    %c0_25 = arith.constant 0 : index
    %c0_26 = arith.constant 0 : index
    %38 = vector.load %arg5[%c0_24, %c0_25, %c0_26] : memref<2x4x16xf32, #tpu.memory_space<vmem>>, vector<2x4x16xf32>
    tpu.vector_store %arg5[%c0_24, %c0_25, %c0_26], %37 {strides = array<i32>} : memref<2x4x16xf32, #tpu.memory_space<vmem>>, vector<2x4x16xf32>,
    return
  }
}

</mosaic_0001>

<llo_original>
// kernel: tpu_custom_call.1
$region0: #{tpu_custom_call.1}
  #allocation0 [shape = 'u32[]', space=smem, size = 0x4, offset = 0x4, fixed_abs, tag = 'smem constant byte address 0x4 - core index']
  #allocation1 [shape = 'u32[72,128]{1,0:T(1,128)}', space=vmem, size = 0x9000, scoped, tag = 'internal scratch']
  %s0 = inlined_call_operand.vmem [shape: f32[2,4,16], index: 0, kind: input, shape index: {}]
  %s1 = inlined_call_operand.vmem [shape: f32[2,4,1], index: 1, kind: input, shape index: {}]
  %s2 = inlined_call_operand.vmem [shape: f32[2,4,1], index: 2, kind: input, shape index: {}]
  %s3 = inlined_call_operand.vmem [shape: f32[1,4,1], index: 3, kind: input, shape index: {}]
  %s4 = inlined_call_operand.vmem [shape: f32[1,4,1], index: 4, kind: input, shape index: {}]
  %s5 = inlined_call_operand.hbm [shape: f32[2,4,16], index: 5, kind: output, shape index: {}]
  %s6 = sld [smem:[#allocation0]]
  $region30: #{tpu_custom_call.1} parent=0
    _
  %s8 = ssub.s32 1, %s6
  %s9 = scalar_select 0, %s8, %s6
  $region1: #{tpu_custom_call.1} parent=0
    #allocation2 [shape = 'u8[4096]{0}', space=vmem, size = 0x1000, scoped, tag = 'output window, operand 0, single buffered']
    #allocation3 [shape = 's32[1]{0}', space=sflag, size = 0x4, scoped, tag = 'scoped memory for tpu_custom_call.1']
    %10 = vsyncpa [#allocation3], 0
    // Predicated region
    $region2: #{tpu_custom_call.1} parent=1 // pred_check
      _
    $region3: #{tpu_custom_call.1} parent=1 // pred_check_branch
      %12 = sbr.rel (0) target = $region5
    $region4: #{tpu_custom_call.1} parent=1 // pred_region
      _
    $region5: #{tpu_custom_call.1} parent=1 // pred_fallthru
      _
    // Predicated region
    $region6: #{tpu_custom_call.1} parent=1 // pred_check
      _
    $region7: #{tpu_custom_call.1} parent=1 // pred_check_branch
      %14 = sbr.rel (0) target = $region9
    $region8: #{tpu_custom_call.1} parent=1 // pred_region
      _
    $region9: #{tpu_custom_call.1} parent=1 // pred_fallthru
      _
    // Predicated region
    $region10: #{tpu_custom_call.1} parent=1 // pred_check
      _
    $region11: #{tpu_custom_call.1} parent=1 // pred_check_branch
      %16 = sbr.rel (0) target = $region13
    $region12: #{tpu_custom_call.1} parent=1 // pred_region
      _
    $region13: #{tpu_custom_call.1} parent=1 // pred_fallthru
      _
    // Predicated region
    $region14: #{tpu_custom_call.1} parent=1 // pred_check
      _
    $region15: #{tpu_custom_call.1} parent=1 // pred_check_branch
      %18 = sbr.rel (0) target = $region17
    $region16: #{tpu_custom_call.1} parent=1 // pred_region
      _
    $region17: #{tpu_custom_call.1} parent=1 // pred_fallthru
      _
    // Predicated region
    $region18: #{tpu_custom_call.1} parent=1 // pred_check
      _
    $region19: #{tpu_custom_call.1} parent=1 // pred_check_branch
      %20 = sbr.rel (0) target = $region21
    $region20: #{tpu_custom_call.1} parent=1 // pred_region
      _
    $region21: #{tpu_custom_call.1} parent=1 // pred_fallthru
      _
    %v21 = vld [vmem:[%s0] sm:$0xf]
    %v22 = vld [vmem:[%s0 + $0x4] sm:$0xf]
    %vm23 = vcmask 125952
    %v24 = vsel %vm23, %v21, 0.0
    %25 = vadd.xlane.f32.xlu0 %v24
    %v26 = vpop.xlane.xlu0 %25
    %v27 = vsel %vm23, %v22, 0.0
    %28 = vadd.xlane.f32.xlu0 %v27
    %v29 = vpop.xlane.xlu0 %28
    %vm30 = vcmask 1043456
    %v31 = vsel %vm30, %v26, 0.0
    %v32 = vsel %vm30, %v29, 0.0
    %v33 = vadd.f32 %v31, %v32
    %v34 = vmul.f32 %v21, %v21
    %v35 = vmul.f32 %v22, %v22
    %v36 = vsel %vm23, %v34, 0.0
    %37 = vadd.xlane.f32.xlu0 %v36
    %v38 = vpop.xlane.xlu0 %37
    %v39 = vsel %vm23, %v35, 0.0
    %40 = vadd.xlane.f32.xlu0 %v39
    %v41 = vpop.xlane.xlu0 %40
    %v42 = vsel %vm30, %v38, 0.0
    %v43 = vsel %vm30, %v41, 0.0
    %v44 = vadd.f32 %v42, %v43
    %v45 = vmul.f32 %v33, 0.03125
    %v46 = vmul.f32 %v44, 0.03125
    %v47 = vmul.f32 %v45, %v45
    %v48 = vsub.f32 %v46, %v47
    %v49 = vmax.f32 %v48, 0.0
    %v50 = vadd.f32 %v49, 1e-05
    %v51 = vrsqrt.pop %v50
    %v52 = vmul.f32 %v51, %v50
    %v53 = vmul.f32 %v52, %v51
    %v54 = vmul.f32 0.5, %v53
    %v55 = vsub.f32 1.5, %v54
    %v56 = vmul.f32 %v51, %v55
    %vm57 = vweird.f32 %v50
    %vm58 = vweird.f32 %v51
    %vm59 = vmor %vm57, %vm58
    %v60 = vsel %vm59, %v51, %v56
    %v61 = vld [vmem:[%s3] sm:$0xf]
    %v62 = vmul.f32 %v60, %v61
    %v63 = vld [vmem:[%s1] sm:$0xf]
    %v64 = vld [vmem:[%s1 + $0x4] sm:$0xf]
    %v65 = vmul.f32 %v62, %v63
    %v66 = vmul.f32 %v62, %v64
    %v67 = vld [vmem:[%s4] sm:$0xf]
    %v68 = vmul.f32 %v45, %v62
    %v69 = vsub.f32 %v67, %v68
    %v70 = vmul.f32 %v69, %v63
    %v71 = vmul.f32 %v69, %v64
    %v72 = vld [vmem:[%s2] sm:$0xf]
    %v73 = vld [vmem:[%s2 + $0x4] sm:$0xf]
    %v74 = vadd.f32 %v70, %v72
    %v75 = vadd.f32 %v71, %v73
    %77 = vset.pattern.permute.xlu0 0
    %78 = vperm.xlu0 %77, %v65
    %v79 = vpop.permute.xlu0 %78
    %82 = vset.pattern.permute.xlu0 0
    %83 = vperm.xlu0 %82, %v66
    %v84 = vpop.permute.xlu0 %83
    %v86 = vmul.f32 %v21, %v79
    %v87 = vmul.f32 %v22, %v84
    %89 = vset.pattern.permute.xlu0 0
    %90 = vperm.xlu0 %89, %v74
    %v91 = vpop.permute.xlu0 %90
    %94 = vset.pattern.permute.xlu0 0
    %95 = vperm.xlu0 %94, %v75
    %v96 = vpop.permute.xlu0 %95
    %v98 = vadd.f32 %v86, %v91
    %v99 = vadd.f32 %v87, %v96
    %100 = vst.msk [vmem:[#allocation2] sm:$0xf] %vm23, %v98
    %101 = vst.msk [vmem:[#allocation2 + $0x4] sm:$0xf] %vm23, %v99
    // Predicated region
    $region22: #{tpu_custom_call.1} parent=1 // pred_check
      _
    $region23: #{tpu_custom_call.1} parent=1 // pred_check_branch
      %103 = sbr.rel (0) target = $region25
    $region24: #{tpu_custom_call.1} parent=1 // pred_region
      %105 = vsyncadd [#allocation3], 0
      %s106 = sshll.u32 [#allocation2], 4
      %s107 = int_to_ptr.vmem [resolvable:$true] %s106
      %s108 = sshll.u32 %s5, 4
      %s109 = int_to_ptr.hbm [resolvable:$true] %s108
      %114 = dma.vmem_to_hbm [thread:$0]  %s107, 128, %s109, [#allocation3], 64, 64, 4
    $region25: #{tpu_custom_call.1} parent=1 // pred_fallthru
      _
    // Predicated region
    $region26: #{tpu_custom_call.1} parent=1 // pred_check
      _
    $region27: #{tpu_custom_call.1} parent=1 // pred_check_branch
      %116 = sbr.rel (0) target = $region29
    $region28: #{tpu_custom_call.1} parent=1 // pred_region
      %118 = dma.done [#allocation3], 128
    $region29: #{tpu_custom_call.1} parent=1 // pred_fallthru
      _
    %119 = vsyncpa [#allocation3], 1

</llo_original>
